<compile_context>
chip_gen: v7x
topology: tpu7x:2x2x1
jax: 0.10.0
libtpu: 0.0.40
codegen_flags: <defaults>
</compile_context>

<pallas_src>
import functools

import numpy as np
import jax
import jax.numpy as jnp
from jax.experimental import pallas as pl
from jax.experimental.pallas import tpu as pltpu


def _round_up(x, m):
    return ((x + m - 1) // m) * m


def _fused_mlp_kernel(x_ref, w1_ref, b1_ref, w2_ref, b2_ref, o_ref, h_acc):
    """One (batch-tile, k-tile) step of the fused multi-task 2-layer MLP.

    Grid = (num_batch_tiles, num_k_tiles); k tiles the layer-1 contraction (D) axis.
      x_ref:  (TB, TK)   bf16   batch/K tile of the input
      w1_ref: (TK, TH)   bf16   K-tile of the stacked layer-1 weight
      b1_ref: (1,  TH)   f32
      w2_ref: (TH, OP)   bf16   block-diagonal layer-2 weight (resident across grid)
      b2_ref: (1,  OP)   f32
      o_ref:  (TB, OP)   f32    packed [cls | reg] output slab
      h_acc:  (TB, TH)   f32    VMEM accumulator for the layer-1 partial sums
    """
    k = pl.program_id(1)

    @pl.when(k == 0)
    def _():
        h_acc[...] = jnp.zeros_like(h_acc)

    # Layer 1 partial matmul on the MXU, f32 accumulation.
    h_acc[...] += jnp.dot(x_ref[...], w1_ref[...],
                          preferred_element_type=jnp.float32)

    @pl.when(k == pl.num_programs(1) - 1)
    def _():
        # Bias + ReLU in f32 (Dropout is identity in eval mode).
        h = jnp.maximum(h_acc[...] + b1_ref[...], 0.0)
        # Layer 2: block-diagonal weight -> packed, lane-dense output.
        o_ref[...] = (jnp.dot(h.astype(w2_ref.dtype), w2_ref[...],
                              preferred_element_type=jnp.float32)
                      + b2_ref[...]).astype(o_ref.dtype)


def _run_fused_mlp(x_pad, w1, b1, w2, b2, *, tb, tk):
    """x_pad: (B_pad, D_pad) bf16; w1: (D_pad, TH_pad) bf16; w2: (TH_pad, O_pad) bf16."""
    b_pad, d_pad = x_pad.shape
    th_pad = w1.shape[1]
    o_pad = w2.shape[1]
    nb = b_pad // tb
    nk = d_pad // tk

    # Rough VMEM budget: double-buffered x/W1 tiles, resident W2/biases,
    # accumulator scratch, double-buffered output tile.
    vmem_est = (2 * tb * tk * 2 + 2 * tk * th_pad * 2 + th_pad * o_pad * 2
                + 2 * th_pad * 4 + 2 * o_pad * 4
                + tb * th_pad * 4 + 2 * tb * o_pad * 4)
    vmem_limit = int(min(max(2 * vmem_est, 16 * 1024 * 1024), 64 * 1024 * 1024))

    return pl.pallas_call(
        _fused_mlp_kernel,
        out_shape=jax.ShapeDtypeStruct((b_pad, o_pad), jnp.float32),
        grid_spec=pltpu.PrefetchScalarGridSpec(
            num_scalar_prefetch=0,
            grid=(nb, nk),
            in_specs=[
                pl.BlockSpec((tb, tk), lambda b, k: (b, k)),         # x tile
                pl.BlockSpec((tk, th_pad), lambda b, k: (k, 0)),     # W1 k-tile
                pl.BlockSpec((1, th_pad), lambda b, k: (0, 0)),      # b1 (resident)
                pl.BlockSpec((th_pad, o_pad), lambda b, k: (0, 0)),  # W2 (resident)
                pl.BlockSpec((1, o_pad), lambda b, k: (0, 0)),       # b2 (resident)
            ],
            out_specs=pl.BlockSpec((tb, o_pad), lambda b, k: (b, 0)),
            scratch_shapes=[pltpu.VMEM((tb, th_pad), jnp.float32)],
        ),
        compiler_params=pltpu.CompilerParams(
            dimension_semantics=("parallel", "arbitrary"),
            vmem_limit_bytes=vmem_limit),
    )(x_pad, w1, b1, w2, b2)


@functools.partial(jax.jit, static_argnames=("tb", "tk"))
def _fused_forward(x, w1, b1, w2, b2, *, tb, tk):
    """Pads x, runs the fused kernel, returns the unpadded-rows packed output."""
    B, D = x.shape
    d_pad = w1.shape[0]
    b_pad = _round_up(B, tb)
    x_pad = jnp.pad(x.astype(jnp.float32),
                    ((0, b_pad - B), (0, d_pad - D))).astype(jnp.bfloat16)
    out = _run_fused_mlp(x_pad, w1, b1, w2, b2, tb=tb, tk=tk)
    return out[:B]


class MultiScalePredictionHeadPallas:
    """JAX/Pallas re-implementation of MultiScalePredictionHead.forward (eval mode)."""

    def __init__(self, input_dim, task_configs, dropout=0.1,
                 uncertainty_weighting=False,
                 classification_tasks_list=None, regression_tasks_list=None,
                 key=None):
        # uncertainty_weighting heads are never used in forward(), so they are
        # ignored here; dropout is identity in eval mode.
        self.input_dim = input_dim
        self.hidden = input_dim // 2
        self.task_configs = task_configs
        self.classification_tasks_list = classification_tasks_list or []
        self.regression_tasks_list = regression_tasks_list or []

        if key is None:
            key = jax.random.PRNGKey(0)

        # Per-task parameter init (PyTorch Linear-style uniform +-1/sqrt(fan_in)).
        self.params = {}
        for task_name in task_configs:
            out_dim = task_configs[task_name].get("output_dim", 1)
            key, k1, k2, k3, k4 = jax.random.split(key, 5)
            lim1 = 1.0 / (input_dim ** 0.5)
            lim2 = 1.0 / (self.hidden ** 0.5)
            self.params[task_name] = {
                "w1": jax.random.uniform(k1, (input_dim, self.hidden), jnp.float32, -lim1, lim1),
                "b1": jax.random.uniform(k2, (self.hidden,), jnp.float32, -lim1, lim1),
                "w2": jax.random.uniform(k3, (self.hidden, out_dim), jnp.float32, -lim2, lim2),
                "b2": jax.random.uniform(k4, (out_dim,), jnp.float32, -lim2, lim2),
                "out_dim": out_dim,
            }

        # K (contraction) tiling: single 128-aligned block for small D, 512-wide
        # tiles for large D so the W1 tile stays within v7x's scoped VMEM.
        if input_dim > 512:
            self._tk = 512
        else:
            self._tk = _round_up(max(input_dim, 1), 128)
        self._d_pad = _round_up(input_dim, self._tk)

        # ---- Build the fused, packed weights (host-side, once) ----
        cls_names = [t for t in self.classification_tasks_list if t in self.params]
        reg_names = [t for t in self.regression_tasks_list if t in self.params]
        names = cls_names + reg_names            # output column order: cls then reg
        self._num_tasks = len(names)
        self.sum_cls = sum(self.params[t]["out_dim"] for t in cls_names)
        self.sum_reg = sum(self.params[t]["out_dim"] for t in reg_names)

        if self._num_tasks > 0:
            H = self.hidden
            TH = self._num_tasks * H
            th_pad = _round_up(max(TH, 1), 128)
            o_pad = _round_up(max(self.sum_cls + self.sum_reg, 1), 128)

            w1p = np.zeros((self._d_pad, th_pad), np.float32)
            b1p = np.zeros((1, th_pad), np.float32)
            w2p = np.zeros((th_pad, o_pad), np.float32)   # block-diagonal
            b2p = np.zeros((1, o_pad), np.float32)
            col = 0
            for ti, name in enumerate(names):
                p = self.params[name]
                od = p["out_dim"]
                w1p[:input_dim, ti * H:(ti + 1) * H] = np.asarray(p["w1"])
                b1p[0, ti * H:(ti + 1) * H] = np.asarray(p["b1"])
                w2p[ti * H:(ti + 1) * H, col:col + od] = np.asarray(p["w2"])
                b2p[0, col:col + od] = np.asarray(p["b2"])
                col += od

            # bf16 weights (halves HBM traffic, native MXU path); f32 biases.
            self._w1_p = jnp.asarray(w1p, jnp.bfloat16)
            self._b1_p = jnp.asarray(b1p, jnp.float32)
            self._w2_p = jnp.asarray(w2p, jnp.bfloat16)
            self._b2_p = jnp.asarray(b2p, jnp.float32)

    def __call__(self, x):
        B = x.shape[0]
        if self._num_tasks == 0:
            z = jnp.zeros((B, 0), dtype=x.dtype)
            return z, z

        # Batch tile: >=8 rows (sublane aligned), capped at 128 for large batches.
        tb = 128 if B > 128 else _round_up(max(B, 1), 8)
        out = _fused_forward(x, self._w1_p, self._b1_p, self._w2_p, self._b2_p,
                             tb=tb, tk=self._tk)            # (B, O_pad) f32
        cls_preds = out[:, :self.sum_cls]
        reg_preds = out[:, self.sum_cls:self.sum_cls + self.sum_reg]
        return cls_preds, reg_preds

    # Pure-JAX f32 reference for correctness checking.
    def reference(self, x):
        def mlp(p, x):
            h = jnp.maximum(x @ p["w1"] + p["b1"], 0.0)
            return h @ p["w2"] + p["b2"]

        cls_list = [mlp(self.params[t], x) for t in self.classification_tasks_list
                    if t in self.params]
        reg_list = [mlp(self.params[t], x) for t in self.regression_tasks_list
                    if t in self.params]
        cls = jnp.concatenate(cls_list, axis=1) if cls_list else jnp.zeros((x.shape[0], 0))
        reg = jnp.concatenate(reg_list, axis=1) if reg_list else jnp.zeros((x.shape[0], 0))
        return cls, reg


if __name__ == "__main__":
    B = 8
    input_dim = 32

    task_configs = {
        "cls_task_a": {"output_dim": 3},
        "cls_task_b": {"output_dim": 5},
        "reg_task_a": {"output_dim": 2},
        "reg_task_b": {"output_dim": 4},
    }
    head = MultiScalePredictionHeadPallas(
        input_dim=input_dim,
        task_configs=task_configs,
        classification_tasks_list=["cls_task_a", "cls_task_b"],
        regression_tasks_list=["reg_task_a", "reg_task_b"],
        key=jax.random.PRNGKey(0),
    )

    x = jax.random.normal(jax.random.PRNGKey(0), (B, input_dim), dtype=jnp.float32)

    cls_preds, reg_preds = head(x)
    cls_preds = jax.block_until_ready(cls_preds)
    reg_preds = jax.block_until_ready(reg_preds)

    # Sanity check against the pure-JAX f32 reference (bf16 weights => looser tol).
    cls_ref, reg_ref = head.reference(x)
    assert cls_preds.shape == (B, 3 + 5)
    assert reg_preds.shape == (B, 2 + 4)
    assert jnp.allclose(cls_preds, cls_ref, atol=2e-2, rtol=2e-2)
    assert jnp.allclose(reg_preds, reg_ref, atol=2e-2, rtol=2e-2)

    print("KERNEL_OK")
</pallas_src>

<mosaic_0001>
module attributes {stable_mosaic.version = 11 : i64} {
  func.func @_fused_mlp_kernel(%arg0: i32, %arg1: i32, %arg2: memref<8x128xbf16, #tpu.memory_space<vmem>>, %arg3: memref<128x128xbf16, #tpu.memory_space<vmem>>, %arg4: memref<1x128xf32, #tpu.memory_space<vmem>>, %arg5: memref<128x128xbf16, #tpu.memory_space<vmem>>, %arg6: memref<1x128xf32, #tpu.memory_space<vmem>>, %arg7: memref<8x128xf32, #tpu.memory_space<vmem>>, %arg8: memref<8x128xf32, #tpu.memory_space<vmem>>) attributes {dimension_semantics = [#tpu.dimension_semantics<parallel>, #tpu.dimension_semantics<arbitrary>], iteration_bounds = array<i64: 1, 1>, scalar_prefetch = 0 : i64, scratch_operands = 1 : i64, tpu.core_type = #tpu.core_type<tc>, window_params = [{transform_indices = @transform_0, window_bounds = array<i64: 8, 128>}, {transform_indices = @transform_1, window_bounds = array<i64: 128, 128>}, {pipeline_mode = #tpu.pipeline_mode<synchronous>, transform_indices = @transform_2, window_bounds = array<i64: 1, 128>}, {pipeline_mode = #tpu.pipeline_mode<synchronous>, transform_indices = @transform_3, window_bounds = array<i64: 128, 128>}, {pipeline_mode = #tpu.pipeline_mode<synchronous>, transform_indices = @transform_4, window_bounds = array<i64: 1, 128>}, {transform_indices = @transform_5, window_bounds = array<i64: 8, 128>}]} {
    %c0_i32 = arith.constant 0 : i32
    %0 = arith.cmpi eq, %arg1, %c0_i32 : i32
    %1 = arith.extui %0 : i1 to i32
    %c0_i32_0 = arith.constant 0 : i32
    %2 = arith.cmpi ne, %1, %c0_i32_0 : i32
    scf.if %2 {
      %cst_10 = arith.constant 0.000000e+00 : f32
      %12 = vector.broadcast %cst_10 : f32 to vector<8x128xf32>
      %c0_11 = arith.constant 0 : index
      %c0_12 = arith.constant 0 : index
      %13 = vector.load %arg8[%c0_11, %c0_12] : memref<8x128xf32, #tpu.memory_space<vmem>>, vector<8x128xf32>
      tpu.vector_store %arg8[%c0_11, %c0_12], %12 {strides = array<i32>} : memref<8x128xf32, #tpu.memory_space<vmem>>, vector<8x128xf32>,
    } else {
    }
    %c0 = arith.constant 0 : index
    %c0_1 = arith.constant 0 : index
    %3 = vector.load %arg8[%c0, %c0_1] : memref<8x128xf32, #tpu.memory_space<vmem>>, vector<8x128xf32>
    %c0_2 = arith.constant 0 : index
    %c0_3 = arith.constant 0 : index
    %4 = vector.load %arg2[%c0_2, %c0_3] : memref<8x128xbf16, #tpu.memory_space<vmem>>, vector<8x128xbf16>
    %c0_4 = arith.constant 0 : index
    %c0_5 = arith.constant 0 : index
    %5 = vector.load %arg3[%c0_4, %c0_5] : memref<128x128xbf16, #tpu.memory_space<vmem>>, vector<128x128xbf16>
    %cst = arith.constant dense<0.000000e+00> : vector<8x128xf32>
    %6 = tpu.matmul %4, %5, %cst {dimension_numbers = #tpu.dot_dimension_numbers<[1], [0], [0], [1], [0, 0, 1, 1], [], []>} : vector<8x128xbf16>, vector<128x128xbf16>, vector<8x128xf32> -> vector<8x128xf32>
    %7 = arith.addf %3, %6 : vector<8x128xf32>
    %c0_6 = arith.constant 0 : index
    %c0_7 = arith.constant 0 : index
    %8 = vector.load %arg8[%c0_6, %c0_7] : memref<8x128xf32, #tpu.memory_space<vmem>>, vector<8x128xf32>
    tpu.vector_store %arg8[%c0_6, %c0_7], %7 {strides = array<i32>} : memref<8x128xf32, #tpu.memory_space<vmem>>, vector<8x128xf32>,
    %c0_i32_8 = arith.constant 0 : i32
    %9 = arith.cmpi eq, %arg1, %c0_i32_8 : i32
    %10 = arith.extui %9 : i1 to i32
    %c0_i32_9 = arith.constant 0 : i32
    %11 = arith.cmpi ne, %10, %c0_i32_9 : i32
    scf.if %11 {
      %c0_10 = arith.constant 0 : index
      %c0_11 = arith.constant 0 : index
      %12 = vector.load %arg8[%c0_10, %c0_11] : memref<8x128xf32, #tpu.memory_space<vmem>>, vector<8x128xf32>
      %c0_12 = arith.constant 0 : index
      %c0_13 = arith.constant 0 : index
      %13 = vector.load %arg4[%c0_12, %c0_13] : memref<1x128xf32, #tpu.memory_space<vmem>>, vector<1x128xf32>
      %14 = vector.broadcast %13 : vector<1x128xf32> to vector<8x128xf32>
      %15 = arith.addf %12, %14 : vector<8x128xf32>
      %cst_14 = arith.constant 0.000000e+00 : f32
      %16 = vector.broadcast %cst_14 : f32 to vector<8x128xf32>
      %17 = arith.maximumf %15, %16 : vector<8x128xf32>
      %18 = arith.truncf %17 : vector<8x128xf32> to vector<8x128xbf16>
      %c0_15 = arith.constant 0 : index
      %c0_16 = arith.constant 0 : index
      %19 = vector.load %arg5[%c0_15, %c0_16] : memref<128x128xbf16, #tpu.memory_space<vmem>>, vector<128x128xbf16>
      %cst_17 = arith.constant dense<0.000000e+00> : vector<8x128xf32>
      %20 = tpu.matmul %18, %19, %cst_17 {dimension_numbers = #tpu.dot_dimension_numbers<[1], [0], [0], [1], [0, 0, 1, 1], [], []>} : vector<8x128xbf16>, vector<128x128xbf16>, vector<8x128xf32> -> vector<8x128xf32>
      %c0_18 = arith.constant 0 : index
      %c0_19 = arith.constant 0 : index
      %21 = vector.load %arg6[%c0_18, %c0_19] : memref<1x128xf32, #tpu.memory_space<vmem>>, vector<1x128xf32>
      %22 = vector.broadcast %21 : vector<1x128xf32> to vector<8x128xf32>
      %23 = arith.addf %20, %22 : vector<8x128xf32>
      %c0_20 = arith.constant 0 : index
      %c0_21 = arith.constant 0 : index
      %24 = vector.load %arg7[%c0_20, %c0_21] : memref<8x128xf32, #tpu.memory_space<vmem>>, vector<8x128xf32>
      tpu.vector_store %arg7[%c0_20, %c0_21], %23 {strides = array<i32>} : memref<8x128xf32, #tpu.memory_space<vmem>>, vector<8x128xf32>,
    } else {
    }
    return
  }
  func.func @transform_0(%arg0: i32, %arg1: i32) -> (i32, i32) {
    %c0_i32 = arith.constant 0 : i32
    return %arg0, %arg1 : i32, i32
  }
  func.func @transform_1(%arg0: i32, %arg1: i32) -> (i32, i32) {
    %c0_i32 = arith.constant 0 : i32
    %c0_i32_0 = arith.constant 0 : i32
    return %arg1, %c0_i32 : i32, i32
  }
  func.func @transform_2(%arg0: i32, %arg1: i32) -> (i32, i32) {
    %c0_i32 = arith.constant 0 : i32
    %c0_i32_0 = arith.constant 0 : i32
    %c0_i32_1 = arith.constant 0 : i32
    return %c0_i32, %c0_i32_0 : i32, i32
  }
  func.func @transform_3(%arg0: i32, %arg1: i32) -> (i32, i32) {
    %c0_i32 = arith.constant 0 : i32
    %c0_i32_0 = arith.constant 0 : i32
    %c0_i32_1 = arith.constant 0 : i32
    return %c0_i32, %c0_i32_0 : i32, i32
  }
  func.func @transform_4(%arg0: i32, %arg1: i32) -> (i32, i32) {
    %c0_i32 = arith.constant 0 : i32
    %c0_i32_0 = arith.constant 0 : i32
    %c0_i32_1 = arith.constant 0 : i32
    return %c0_i32, %c0_i32_0 : i32, i32
  }
  func.func @transform_5(%arg0: i32, %arg1: i32) -> (i32, i32) {
    %c0_i32 = arith.constant 0 : i32
    %c0_i32_0 = arith.constant 0 : i32
    return %arg0, %c0_i32 : i32, i32
  }
}

</mosaic_0001>

<llo_original>
// kernel: _fused_forward.1
$region0: #{_fused_forward.1}
  #allocation0 [shape = 'u32[]', space=smem, size = 0x4, offset = 0x4, fixed_abs, tag = 'smem constant byte address 0x4 - core index']
  #allocation1 [shape = 'u32[144,128]{1,0:T(1,128)}', space=vmem, size = 0x12000, scoped, tag = 'internal scratch']
  #allocation2 [shape = 'f32[8,128]{1,0:T(8,128)}', space=vmem, size = 0x1000, scoped, tag = 'scratch operand']
  %s0 = inlined_call_operand.vmem [shape: bf16[8,128], index: 0, kind: input, shape index: {}]
  %s1 = inlined_call_operand.hbm [shape: bf16[128,128], index: 1, kind: input, shape index: {}]
  %s2 = inlined_call_operand.vmem [shape: f32[1,128], index: 2, kind: input, shape index: {}]
  %s3 = inlined_call_operand.hbm [shape: bf16[128,128], index: 3, kind: input, shape index: {}]
  %s4 = inlined_call_operand.vmem [shape: f32[1,128], index: 4, kind: input, shape index: {}]
  %s5 = inlined_call_operand.hbm [shape: f32[8,128], index: 5, kind: output, shape index: {}]
  %s6 = sld [smem:[#allocation0]]
  $region46: #{_fused_forward.1} parent=0
    _
  %s8 = ssub.s32 1, %s6
  %s9 = scalar_select 0, %s8, %s6
  $region1: #{_fused_forward.1} parent=0
    #allocation3 [shape = 'u8[32768]{0}', space=vmem, size = 0x8000, scoped, tag = 'input window, operand 1, single buffered']
    #allocation4 [shape = 's32[1]{0}', space=sflag, size = 0x4, scoped, tag = 'scoped memory for _fused_forward.1']
    #allocation5 [shape = 's32[1]{0}', space=sflag, size = 0x4, scoped, tag = 'scoped memory for _fused_forward.1']
    #allocation6 [shape = 'u8[32768]{0}', space=vmem, size = 0x8000, scoped, tag = 'input window, operand 3, single buffered']
    #allocation7 [shape = 's32[1]{0}', space=sflag, size = 0x4, scoped, tag = 'scoped memory for _fused_forward.1']
    #allocation8 [shape = 'u8[4096]{0}', space=vmem, size = 0x1000, scoped, tag = 'output window, operand 0, single buffered']
    %10 = vsyncpa [#allocation4], 0
    %11 = vsyncpa [#allocation7], 0
    %12 = vsyncpa [#allocation5], 0
    // Predicated region
    $region2: #{_fused_forward.1} parent=1 // pred_check
      _
    $region3: #{_fused_forward.1} parent=1 // pred_check_branch
      %14 = sbr.rel (0) target = $region5
    $region4: #{_fused_forward.1} parent=1 // pred_region
      _
    $region5: #{_fused_forward.1} parent=1 // pred_fallthru
      _
    // Predicated region
    $region6: #{_fused_forward.1} parent=1 // pred_check
      _
    $region7: #{_fused_forward.1} parent=1 // pred_check_branch
      %16 = sbr.rel (0) target = $region9
    $region8: #{_fused_forward.1} parent=1 // pred_region
      %s18 = ssub.s32 1024, 1024
      %19 = vsyncadd [#allocation4], %s18
      %s20 = sshll.u32 [#allocation3], 4
      %s21 = int_to_ptr.vmem [resolvable:$true] %s20
      %26 = dma.hbm_to_vmem [thread:$0]  %s1, 1024, %s21, [#allocation4], 64, 64, 4
    $region9: #{_fused_forward.1} parent=1 // pred_fallthru
      _
    // Predicated region
    $region10: #{_fused_forward.1} parent=1 // pred_check
      _
    $region11: #{_fused_forward.1} parent=1 // pred_check_branch
      %28 = sbr.rel (0) target = $region13
    $region12: #{_fused_forward.1} parent=1 // pred_region
      _
    $region13: #{_fused_forward.1} parent=1 // pred_fallthru
      _
    // Predicated region
    $region14: #{_fused_forward.1} parent=1 // pred_check
      _
    $region15: #{_fused_forward.1} parent=1 // pred_check_branch
      %30 = sbr.rel (0) target = $region17
    $region16: #{_fused_forward.1} parent=1 // pred_region
      %s32 = ssub.s32 1024, 1024
      %33 = vsyncadd [#allocation7], %s32
      %s34 = sshll.u32 [#allocation6], 4
      %s35 = int_to_ptr.vmem [resolvable:$true] %s34
      %40 = dma.hbm_to_vmem [thread:$0]  %s3, 1024, %s35, [#allocation7], 64, 64, 4
    $region17: #{_fused_forward.1} parent=1 // pred_fallthru
      _
    // Predicated region
    $region18: #{_fused_forward.1} parent=1 // pred_check
      _
    $region19: #{_fused_forward.1} parent=1 // pred_check_branch
      %42 = sbr.rel (0) target = $region21
    $region20: #{_fused_forward.1} parent=1 // pred_region
      _
    $region21: #{_fused_forward.1} parent=1 // pred_fallthru
      _
    // Predicated region
    $region22: #{_fused_forward.1} parent=1 // pred_check
      _
    $region23: #{_fused_forward.1} parent=1 // pred_check_branch
      %44 = sbr.rel (0) target = $region25
    $region24: #{_fused_forward.1} parent=1 // pred_region
      %45 = dma.done [#allocation4], 1024
    $region25: #{_fused_forward.1} parent=1 // pred_fallthru
      _
    // Predicated region
    $region26: #{_fused_forward.1} parent=1 // pred_check
      _
    $region27: #{_fused_forward.1} parent=1 // pred_check_branch
      %47 = sbr.rel (0) target = $region29
    $region28: #{_fused_forward.1} parent=1 // pred_region
      %48 = dma.done [#allocation7], 1024
    $region29: #{_fused_forward.1} parent=1 // pred_fallthru
      _
    %p50 = scmp.eq.s32.totalorder 0, 0
    // Predicated region
    $region30: #{_fused_forward.1} parent=1 // pred_check
      %p51 = pneg %p50
    $region31: #{_fused_forward.1} parent=1 // pred_check_branch
      %53 = sbr.rel (%p51) target = $region33
    $region32: #{_fused_forward.1} parent=1 // pred_region
      %54 = vst [vmem:[#allocation2] sm:$0xff] 0.0
    $region33: #{_fused_forward.1} parent=1 // pred_fallthru
      _
    %v55 = vld [vmem:[#allocation2] sm:$0xff]
    %v56 = vld [vmem:[%s0] sm:$0xf]
    %v57 = vld [vmem:[#allocation3] sm:$0xf]
    %v58 = vld [vmem:[#allocation3 + $0x4] sm:$0xf]
    %v59 = vld [vmem:[#allocation3 + $0x8] sm:$0xf]
    %v60 = vld [vmem:[#allocation3 + $0xc] sm:$0xf]
    %v61 = vld [vmem:[#allocation3 + $0x10] sm:$0xf]
    %v62 = vld [vmem:[#allocation3 + $0x14] sm:$0xf]
    %v63 = vld [vmem:[#allocation3 + $0x18] sm:$0xf]
    %v64 = vld [vmem:[#allocation3 + $0x1c] sm:$0xf]
    %v65 = vld [vmem:[#allocation3 + $0x20] sm:$0xf]
    %v66 = vld [vmem:[#allocation3 + $0x24] sm:$0xf]
    %v67 = vld [vmem:[#allocation3 + $0x28] sm:$0xf]
    %v68 = vld [vmem:[#allocation3 + $0x2c] sm:$0xf]
    %v69 = vld [vmem:[#allocation3 + $0x30] sm:$0xf]
    %v70 = vld [vmem:[#allocation3 + $0x34] sm:$0xf]
    %v71 = vld [vmem:[#allocation3 + $0x38] sm:$0xf]
    %v72 = vld [vmem:[#allocation3 + $0x3c] sm:$0xf]
    %v89 = vunpack.c.l.b16 %v57
    %v90 = vunpack.c.l.b16 %v58
    %v91 = vunpack.c.l.b16 %v59
    %v92 = vunpack.c.l.b16 %v60
    %v93 = vunpack.c.l.b16 %v61
    %v94 = vunpack.c.l.b16 %v62
    %v95 = vunpack.c.l.b16 %v63
    %v96 = vunpack.c.l.b16 %v64
    %v97 = vunpack.c.l.b16 %v65
    %v98 = vunpack.c.l.b16 %v66
    %v99 = vunpack.c.l.b16 %v67
    %v100 = vunpack.c.l.b16 %v68
    %v101 = vunpack.c.l.b16 %v69
    %v102 = vunpack.c.l.b16 %v70
    %v103 = vunpack.c.l.b16 %v71
    %v104 = vunpack.c.l.b16 %v72
    %v105 = vpack.c.b16 %v90, %v89
    %v106 = vpack.c.b16 %v92, %v91
    %v107 = vpack.c.b16 %v94, %v93
    %v108 = vpack.c.b16 %v96, %v95
    %v109 = vpack.c.b16 %v98, %v97
    %v110 = vpack.c.b16 %v100, %v99
    %v111 = vpack.c.b16 %v102, %v101
    %v112 = vpack.c.b16 %v104, %v103
    %121 = vmatprep.subr.bf16.mxu0 0
    %122 = vmatpush1.bf16.msra.mxu0 %v105
    %123 = vmatprep.subr.bf16.mxu0 0
    %124 = vmatpush1.bf16.msra.mxu0 %v106
    %125 = vmatprep.subr.bf16.mxu0 0
    %126 = vmatpush1.bf16.msra.mxu0 %v107
    %127 = vmatprep.subr.bf16.mxu0 0
    %128 = vmatpush1.bf16.msra.mxu0 %v108
    %129 = vmatprep.subr.bf16.mxu0 0
    %130 = vmatpush1.bf16.msra.mxu0 %v109
    %131 = vmatprep.subr.bf16.mxu0 0
    %132 = vmatpush1.bf16.msra.mxu0 %v110
    %133 = vmatprep.subr.bf16.mxu0 0
    %134 = vmatpush1.bf16.msra.mxu0 %v111
    %135 = vmatprep.subr.bf16.mxu0 0
    %136 = vmatpush1.bf16.msra.mxu0 %v112
    %137 = vmatprep.subr.bf16.mxu0 0
    %138 = vmatpush1.bf16.msra.mxu0 0
    %139 = vmatprep.subr.bf16.mxu0 0
    %140 = vmatpush1.bf16.msra.mxu0 0
    %141 = vmatprep.subr.bf16.mxu0 0
    %142 = vmatpush1.bf16.msra.mxu0 0
    %143 = vmatprep.subr.bf16.mxu0 0
    %144 = vmatpush1.bf16.msra.mxu0 0
    %145 = vmatprep.subr.bf16.mxu0 0
    %146 = vmatpush1.bf16.msra.mxu0 0
    %147 = vmatprep.subr.bf16.mxu0 0
    %148 = vmatpush1.bf16.msra.mxu0 0
    %149 = vmatprep.subr.bf16.mxu0 0
    %150 = vmatpush1.bf16.msra.mxu0 0
    %151 = vmatprep.subr.bf16.mxu0 0
    %152 = vmatpush1.bf16.msra.mxu0 0
    %153 = vmatprep.mubr.bf16.mxu0 0
    %154 = vmatmul.mubr.bf16.gmra.mrb[0].mxu0 %v56
    %v155 = vpop.f32.mrb[0].mxu0
    %v156 = vadd.f32 0.0, %v155
    %v157 = vpop.f32.mrb[0].mxu0
    %v158 = vpop.f32.mrb[0].mxu0
    %v159 = vpop.f32.mrb[0].mxu0
    %160 = vdwg.mxu0
    %v161 = vadd.f32 %v55, %v156
    %162 = vst [vmem:[#allocation2] sm:$0xff] %v161
    // Predicated region
    $region34: #{_fused_forward.1} parent=1 // pred_check
      %p163 = pneg %p50
    $region35: #{_fused_forward.1} parent=1 // pred_check_branch
      %165 = sbr.rel (%p163) target = $region37
    $region36: #{_fused_forward.1} parent=1 // pred_region
      %v166 = vld [vmem:[#allocation2] sm:$0xff]
      %v167 = vld [vmem:[%s2] sm:$0x1]
      %v169 = vlaneseq
      %v170 = vshrl.u32 %v169, 7
      %v171 = vsub.s32 0, %v170
      %v172 = vrot.slane %v167, %v171
      %v174 = vadd.f32 %v166, %v172
      %v175 = vmax.f32 %v174, 0.0
      %v176 = vpack.c.bf16 %v175, %v175
      %v177 = vld [vmem:[#allocation6] sm:$0xf]
      %v178 = vld [vmem:[#allocation6 + $0x4] sm:$0xf]
      %v179 = vld [vmem:[#allocation6 + $0x8] sm:$0xf]
      %v180 = vld [vmem:[#allocation6 + $0xc] sm:$0xf]
      %v181 = vld [vmem:[#allocation6 + $0x10] sm:$0xf]
      %v182 = vld [vmem:[#allocation6 + $0x14] sm:$0xf]
      %v183 = vld [vmem:[#allocation6 + $0x18] sm:$0xf]
      %v184 = vld [vmem:[#allocation6 + $0x1c] sm:$0xf]
      %v185 = vld [vmem:[#allocation6 + $0x20] sm:$0xf]
      %v186 = vld [vmem:[#allocation6 + $0x24] sm:$0xf]
      %v187 = vld [vmem:[#allocation6 + $0x28] sm:$0xf]
      %v188 = vld [vmem:[#allocation6 + $0x2c] sm:$0xf]
      %v189 = vld [vmem:[#allocation6 + $0x30] sm:$0xf]
      %v190 = vld [vmem:[#allocation6 + $0x34] sm:$0xf]
      %v191 = vld [vmem:[#allocation6 + $0x38] sm:$0xf]
      %v192 = vld [vmem:[#allocation6 + $0x3c] sm:$0xf]
      %v193 = vld [vmem:[%s4] sm:$0x1]
      %v195 = vlaneseq
      %v196 = vshrl.u32 %v195, 7
      %v197 = vsub.s32 0, %v196
      %v198 = vrot.slane %v193, %v197
      %v216 = vunpack.c.l.b16 %v177
      %v217 = vunpack.c.l.b16 %v178
      %v218 = vunpack.c.l.b16 %v179
      %v219 = vunpack.c.l.b16 %v180
      %v220 = vunpack.c.l.b16 %v181
      %v221 = vunpack.c.l.b16 %v182
      %v222 = vunpack.c.l.b16 %v183
      %v223 = vunpack.c.l.b16 %v184
      %v224 = vunpack.c.l.b16 %v185
      %v225 = vunpack.c.l.b16 %v186
      %v226 = vunpack.c.l.b16 %v187
      %v227 = vunpack.c.l.b16 %v188
      %v228 = vunpack.c.l.b16 %v189
      %v229 = vunpack.c.l.b16 %v190
      %v230 = vunpack.c.l.b16 %v191
      %v231 = vunpack.c.l.b16 %v192
      %v232 = vpack.c.b16 %v217, %v216
      %v233 = vpack.c.b16 %v219, %v218
      %v234 = vpack.c.b16 %v221, %v220
      %v235 = vpack.c.b16 %v223, %v222
      %v236 = vpack.c.b16 %v225, %v224
      %v237 = vpack.c.b16 %v227, %v226
      %v238 = vpack.c.b16 %v229, %v228
      %v239 = vpack.c.b16 %v231, %v230
      %248 = vmatprep.subr.bf16.mxu0 0
      %249 = vmatpush1.bf16.msra.mxu0 %v232
      %250 = vmatprep.subr.bf16.mxu0 0
      %251 = vmatpush1.bf16.msra.mxu0 %v233
      %252 = vmatprep.subr.bf16.mxu0 0
      %253 = vmatpush1.bf16.msra.mxu0 %v234
      %254 = vmatprep.subr.bf16.mxu0 0
      %255 = vmatpush1.bf16.msra.mxu0 %v235
      %256 = vmatprep.subr.bf16.mxu0 0
      %257 = vmatpush1.bf16.msra.mxu0 %v236
      %258 = vmatprep.subr.bf16.mxu0 0
      %259 = vmatpush1.bf16.msra.mxu0 %v237
      %260 = vmatprep.subr.bf16.mxu0 0
      %261 = vmatpush1.bf16.msra.mxu0 %v238
      %262 = vmatprep.subr.bf16.mxu0 0
      %263 = vmatpush1.bf16.msra.mxu0 %v239
      %264 = vmatprep.subr.bf16.mxu0 0
      %265 = vmatpush1.bf16.msra.mxu0 0
      %266 = vmatprep.subr.bf16.mxu0 0
      %267 = vmatpush1.bf16.msra.mxu0 0
      %268 = vmatprep.subr.bf16.mxu0 0
      %269 = vmatpush1.bf16.msra.mxu0 0
      %270 = vmatprep.subr.bf16.mxu0 0
      %271 = vmatpush1.bf16.msra.mxu0 0
      %272 = vmatprep.subr.bf16.mxu0 0
      %273 = vmatpush1.bf16.msra.mxu0 0
      %274 = vmatprep.subr.bf16.mxu0 0
      %275 = vmatpush1.bf16.msra.mxu0 0
      %276 = vmatprep.subr.bf16.mxu0 0
      %277 = vmatpush1.bf16.msra.mxu0 0
      %278 = vmatprep.subr.bf16.mxu0 0
      %279 = vmatpush1.bf16.msra.mxu0 0
      %280 = vmatprep.mubr.bf16.mxu0 0
      %281 = vmatmul.mubr.bf16.gmra.mrb[0].mxu0 %v176
      %v282 = vpop.f32.mrb[0].mxu0
      %v283 = vadd.f32 %v198, %v282
      %v284 = vpop.f32.mrb[0].mxu0
      %v285 = vpop.f32.mrb[0].mxu0
      %v286 = vpop.f32.mrb[0].mxu0
      %287 = vdwg.mxu0
      %288 = vst [vmem:[#allocation8] sm:$0xff] %v283
    $region37: #{_fused_forward.1} parent=1 // pred_fallthru
      _
    // Predicated region
    $region38: #{_fused_forward.1} parent=1 // pred_check
      _
    $region39: #{_fused_forward.1} parent=1 // pred_check_branch
      %290 = sbr.rel (0) target = $region41
    $region40: #{_fused_forward.1} parent=1 // pred_region
      %s292 = ssub.s32 128, 128
      %293 = vsyncadd [#allocation5], %s292
      %s295 = sshll.u32 [#allocation8], 4
      %s296 = int_to_ptr.vmem [resolvable:$true] %s295
      %298 = dma.vmem_to_hbm [thread:$0]  %s296, 128, %s5, [#allocation5]
    $region41: #{_fused_forward.1} parent=1 // pred_fallthru
      _
    // Predicated region
    $region42: #{_fused_forward.1} parent=1 // pred_check
      _
    $region43: #{_fused_forward.1} parent=1 // pred_check_branch
      %300 = sbr.rel (0) target = $region45
    $region44: #{_fused_forward.1} parent=1 // pred_region
      %301 = dma.done [#allocation5], 128
    $region45: #{_fused_forward.1} parent=1 // pred_fallthru
      _
    %302 = vsyncpa [#allocation4], 1
    %303 = vsyncpa [#allocation7], 1
    %304 = vsyncpa [#allocation5], 1

</llo_original>
